<compile_context>
chip_gen: v5e
topology: v5e:2x2
jax: 0.10.0
libtpu: 0.0.40
codegen_flags: <defaults>
</compile_context>

<pallas_src>
import numpy as np
import jax
import jax.numpy as jnp
from jax.experimental import pallas as pl
from jax.experimental.pallas import tpu as pltpu

EPS = 1e-5

# ---------------- model hyper-parameters (small, deterministic) -------------
SEQ_LEN = 8                       # pmp.batch_size
INPUT_DIM = 16                    # inputDim
NUM_FILTER = 4                    # num_filter
FILTER_SIZES = list(range(1, SEQ_LEN, 2))             # [1, 3, 5, 7]
_nf = ([NUM_FILTER] + [NUM_FILTER * 2] * (len(FILTER_SIZES) // 2)
       + [NUM_FILTER] * len(FILTER_SIZES))
NUM_FILTERS = _nf[:len(FILTER_SIZES)]                  # [4, 8, 8, 4]
NUM_FILTER_TOTAL = sum(NUM_FILTERS)                    # 24
SHARED_OUT_DIM = 16               # sharedlayer_output_dim (> 0)
OUTPUT_DIM = 4                    # CNNHighway outputDim
BATCH = 2                         # N

# ---------------- packed-layout constants ------------------------------------
LANE = 128
K_FLAT = SEQ_LEN * INPUT_DIM                 # 128  (flattened (s, d) axis)
GROUP = 32                                   # filters per time position, padded 24 -> 32
CONV_COLS = SEQ_LEN * GROUP                  # 256  (position-major conv output columns)
NT = NUM_FILTER_TOTAL                        # 24
HEAD_ROWS = 48                               # head slab rows (42 used, padded to 48)
ROW_B1 = NT + SHARED_OUT_DIM                 # 40: biases for [bg|bt] and bc
ROW_B2 = ROW_B1 + 1                          # 41: bias for fc (padded to 128 lanes)
NEG_BIG = -1e30                              # mask for invalid / padded conv columns

# On v6e/v7x the MXU is natively bf16; casting matmul operands to bf16 cuts
# MXU passes ~3x.  Kept False so the f32 reference check at 1e-4 stays exact;
# if enabled, loosen the allclose tolerance to ~3e-2.
USE_BF16_MXU = False


def _mm(a, b):
    if USE_BF16_MXU:
        a = a.astype(jnp.bfloat16)
        b = b.astype(jnp.bfloat16)
    return jnp.dot(a, b, preferred_element_type=jnp.float32)


# ------------------------------- Pallas kernel ------------------------------
def _make_kernel():
    def kernel(x_ref, wconv_ref, affine_ref, head_ref, out_ref):
        # ---- fused conv stack: one (N, 128) x (128, 256) matmul ----
        xf = x_ref[...]                                             # (N, 128)
        conv = _mm(xf, wconv_ref[...])                              # (N, 256)

        # bias + ReLU + BatchNorm2d affine, vectorized over all 256 columns.
        v = jnp.maximum(conv + affine_ref[0:1, :], 0.0)
        v = v * affine_ref[1:2, :] + affine_ref[2:3, :]             # invalid cols -> -1e30

        # ---- max-pool over the SEQ_LEN time positions (log-tree over lanes) ----
        width = CONV_COLS
        while width > GROUP:
            half = width // 2
            v = jnp.maximum(v[:, :half], v[:, half:width])
            width = half
        cats = v[:, :NT]                                            # (N, 24)

        # ---- Highway (1 layer, bias = 0); g/t fused into one GEMM ----
        gt = _mm(cats, head_ref[0:NT, 0:2 * NT]) + head_ref[ROW_B1:ROW_B1 + 1, 0:2 * NT]
        g = jnp.maximum(gt[:, :NT], 0.0)
        tg = jax.nn.sigmoid(gt[:, NT:2 * NT])
        hwy = g * tg + (1.0 - tg) * cats

        # ---- compress -> sigmoid (SharedLayers output) ----
        shared = jax.nn.sigmoid(
            _mm(hwy, head_ref[0:NT, 2 * NT:2 * NT + SHARED_OUT_DIM])
            + head_ref[ROW_B1:ROW_B1 + 1, 2 * NT:2 * NT + SHARED_OUT_DIM])

        # ---- head: relu(dropout) -> fc_conv -> relu -> sigmoid ----
        # (dropout is identity in eval mode)
        d = jnp.maximum(shared, 0.0)
        fc = jnp.maximum(
            _mm(d, head_ref[NT:NT + SHARED_OUT_DIM, :])             # wf padded to 128 lanes
            + head_ref[ROW_B2:ROW_B2 + 1, :], 0.0)
        out_ref[...] = jax.nn.sigmoid(fc)                           # lane-dense (N, 128) store

    return kernel


def cnn_highway_forward(x, packed):
    w_conv, affine, head = packed
    N = x.shape[0]
    x_flat = x.reshape(N, K_FLAT)
    vmem = pl.BlockSpec(memory_space=pltpu.MemorySpace.VMEM)
    out = pl.pallas_call(
        _make_kernel(),
        out_shape=jax.ShapeDtypeStruct((N, LANE), jnp.float32),
        in_specs=[vmem] * 4,
        out_specs=vmem,
    )(x_flat, w_conv, affine, head)
    return out[:, :OUTPUT_DIM]


# --------------------------- host-side parameter packing ---------------------
def pack_params(p):
    """Pack all layer parameters into 3 lane-dense f32 slabs.

    w_conv : (128, 256) block-Toeplitz conv weight (BatchNorm1d scale folded in)
    affine : (8, 256)   row0 = conv bias (+BN1 shift fold), row1 = BN2 scale,
                        row2 = BN2 shift (-1e30 on invalid/padded columns)
    head   : (48, 128)  [0:24,0:24]=wg [0:24,24:48]=wt [0:24,48:64]=wc
                        [24:40,0:4]=wf (zero-padded to 128 lanes)
                        row40 = [bg|bt|bc], row41 = bf (padded)
    """
    s1 = np.asarray(p["bn1_scale"]).reshape(SEQ_LEN)
    h1 = np.asarray(p["bn1_shift"]).reshape(SEQ_LEN)

    w_conv = np.zeros((K_FLAT, CONV_COLS), np.float32)
    bias = np.zeros((CONV_COLS,), np.float32)
    scale = np.ones((CONV_COLS,), np.float32)
    shift = np.full((CONV_COLS,), NEG_BIG, np.float32)

    branch_off = np.cumsum([0] + NUM_FILTERS)            # [0, 4, 12, 20, 24]
    for c, (f, fn) in enumerate(zip(FILTER_SIZES, NUM_FILTERS)):
        w = np.asarray(p[f"conv{c}_w"])                   # (f, D, fn)
        b = np.asarray(p[f"conv{c}_b"]).reshape(fn)
        bs = np.asarray(p[f"conv{c}_bn_scale"]).reshape(fn)
        bh = np.asarray(p[f"conv{c}_bn_shift"]).reshape(fn)
        for t in range(SEQ_LEN - f + 1):                  # valid conv positions only
            cols = slice(t * GROUP + branch_off[c], t * GROUP + branch_off[c] + fn)
            for i in range(f):
                rows = slice((t + i) * INPUT_DIM, (t + i + 1) * INPUT_DIM)
                w_conv[rows, cols] = s1[t + i] * w[i]     # fold BN1 scale
            bias[cols] = b + sum(h1[t + i] * w[i].sum(axis=0) for i in range(f))
            scale[cols] = bs
            shift[cols] = bh

    affine = np.zeros((8, CONV_COLS), np.float32)
    affine[0] = bias
    affine[1] = scale
    affine[2] = shift

    head = np.zeros((HEAD_ROWS, LANE), np.float32)
    head[0:NT, 0:NT] = np.asarray(p["wg"])
    head[0:NT, NT:2 * NT] = np.asarray(p["wt"])
    head[0:NT, 2 * NT:2 * NT + SHARED_OUT_DIM] = np.asarray(p["wc"])
    head[NT:NT + SHARED_OUT_DIM, 0:OUTPUT_DIM] = np.asarray(p["wf"])
    head[ROW_B1, 0:NT] = np.asarray(p["bg"]).reshape(-1)
    head[ROW_B1, NT:2 * NT] = np.asarray(p["bt"]).reshape(-1)
    head[ROW_B1, 2 * NT:2 * NT + SHARED_OUT_DIM] = np.asarray(p["bc"]).reshape(-1)
    head[ROW_B2, 0:OUTPUT_DIM] = np.asarray(p["bf"]).reshape(-1)

    return (jnp.asarray(w_conv), jnp.asarray(affine), jnp.asarray(head))


# --------------------------- deterministic params ---------------------------
def init_params(key):
    keys = iter(jax.random.split(key, 64))
    nk = lambda: next(keys)
    p = {}

    def bn_affine(num_ch, shape):
        gamma = jax.random.uniform(nk(), (num_ch,), minval=0.5, maxval=1.5)
        beta = 0.1 * jax.random.normal(nk(), (num_ch,))
        rmean = 0.1 * jax.random.normal(nk(), (num_ch,))
        rvar = jax.random.uniform(nk(), (num_ch,), minval=0.5, maxval=1.5)
        scale = gamma / jnp.sqrt(rvar + EPS)
        shift = beta - rmean * scale
        return (scale.reshape(shape).astype(jnp.float32),
                shift.reshape(shape).astype(jnp.float32))

    p["bn1_scale"], p["bn1_shift"] = bn_affine(SEQ_LEN, (SEQ_LEN, 1))

    for c, (f, fn) in enumerate(zip(FILTER_SIZES, NUM_FILTERS)):
        p[f"conv{c}_w"] = (0.2 * jax.random.normal(nk(), (f, INPUT_DIM, fn))).astype(jnp.float32)
        p[f"conv{c}_b"] = (0.05 * jax.random.normal(nk(), (1, fn))).astype(jnp.float32)
        p[f"conv{c}_bn_scale"], p[f"conv{c}_bn_shift"] = bn_affine(fn, (1, fn))

    def linear(in_f, out_f):
        w = (0.2 * jax.random.normal(nk(), (in_f, out_f))).astype(jnp.float32)
        b = (0.05 * jax.random.normal(nk(), (1, out_f))).astype(jnp.float32)
        return w, b

    p["wg"], p["bg"] = linear(NUM_FILTER_TOTAL, NUM_FILTER_TOTAL)   # highway g
    p["wt"], p["bt"] = linear(NUM_FILTER_TOTAL, NUM_FILTER_TOTAL)   # highway t
    p["wc"], p["bc"] = linear(NUM_FILTER_TOTAL, SHARED_OUT_DIM)     # compress
    p["wf"], p["bf"] = linear(SHARED_OUT_DIM, OUTPUT_DIM)           # fc_conv
    return p


# ------------------------------- pure-JAX ref --------------------------------
def reference_forward(x, p):
    xn = x * p["bn1_scale"][None, :, :] + p["bn1_shift"][None, :, :]
    N = x.shape[0]
    outs = []
    for c, (f, fn) in enumerate(zip(FILTER_SIZES, NUM_FILTERS)):
        pos = []
        for t in range(SEQ_LEN - f + 1):
            acc = jnp.zeros((N, fn), jnp.float32)
            for i in range(f):
                acc = acc + xn[:, t + i, :] @ p[f"conv{c}_w"][i]
            v = jnp.maximum(acc + p[f"conv{c}_b"], 0.0)
            v = v * p[f"conv{c}_bn_scale"] + p[f"conv{c}_bn_shift"]
            pos.append(v)
        outs.append(jnp.max(jnp.stack(pos, 0), axis=0))
    cats = jnp.concatenate(outs, axis=1)
    g = jnp.maximum(cats @ p["wg"] + p["bg"], 0.0)
    tg = jax.nn.sigmoid(cats @ p["wt"] + p["bt"])
    hwy = g * tg + (1.0 - tg) * cats
    shared = jax.nn.sigmoid(hwy @ p["wc"] + p["bc"])
    fc = jnp.maximum(jnp.maximum(shared, 0.0) @ p["wf"] + p["bf"], 0.0)
    return jax.nn.sigmoid(fc)


# ------------------------------------ main -----------------------------------
if __name__ == "__main__":
    key = jax.random.PRNGKey(0)
    kx, kp = jax.random.split(key)
    x = jax.random.normal(kx, (BATCH, SEQ_LEN, INPUT_DIM), dtype=jnp.float32)
    params = init_params(kp)
    packed = pack_params(params)

    out = cnn_highway_forward(x, packed)
    out = jax.block_until_ready(out)

    ref = reference_forward(x, params)
    assert out.shape == (BATCH, OUTPUT_DIM)
    tol = 3e-2 if USE_BF16_MXU else 1e-4
    assert bool(jnp.allclose(out, ref, atol=tol, rtol=tol)), "mismatch vs reference"
    print("KERNEL_OK")
</pallas_src>

<mosaic_0001>
module attributes {stable_mosaic.version = 11 : i64} {
  func.func @kernel(%arg0: memref<2x128xf32, #tpu.memory_space<vmem>>, %arg1: memref<128x256xf32, #tpu.memory_space<vmem>>, %arg2: memref<8x256xf32, #tpu.memory_space<vmem>>, %arg3: memref<48x128xf32, #tpu.memory_space<vmem>>, %arg4: memref<2x128xf32, #tpu.memory_space<vmem>>) attributes {dimension_semantics = [], scalar_prefetch = 0 : i64, scratch_operands = 0 : i64, tpu.core_type = #tpu.core_type<tc>} {
    %c0 = arith.constant 0 : index
    %c0_0 = arith.constant 0 : index
    %0 = vector.load %arg0[%c0, %c0_0] : memref<2x128xf32, #tpu.memory_space<vmem>>, vector<2x128xf32>
    %c0_1 = arith.constant 0 : index
    %c0_2 = arith.constant 0 : index
    %1 = vector.load %arg1[%c0_1, %c0_2] : memref<128x256xf32, #tpu.memory_space<vmem>>, vector<128x256xf32>
    %cst = arith.constant dense<0.000000e+00> : vector<2x256xf32>
    %2 = tpu.matmul %0, %1, %cst {dimension_numbers = #tpu.dot_dimension_numbers<[1], [0], [0], [1], [0, 0, 1, 1], [], []>} : vector<2x128xf32>, vector<128x256xf32>, vector<2x256xf32> -> vector<2x256xf32>
    %c0_3 = arith.constant 0 : index
    %c0_4 = arith.constant 0 : index
    %3 = vector.load %arg2[%c0_3, %c0_4] : memref<8x256xf32, #tpu.memory_space<vmem>>, vector<1x256xf32>
    %4 = vector.broadcast %3 : vector<1x256xf32> to vector<2x256xf32>
    %5 = arith.addf %2, %4 : vector<2x256xf32>
    %cst_5 = arith.constant 0.000000e+00 : f32
    %6 = vector.broadcast %cst_5 : f32 to vector<2x256xf32>
    %7 = arith.maximumf %5, %6 : vector<2x256xf32>
    %c1 = arith.constant 1 : index
    %c0_6 = arith.constant 0 : index
    %8 = vector.load %arg2[%c1, %c0_6] : memref<8x256xf32, #tpu.memory_space<vmem>>, vector<1x256xf32>
    %9 = vector.broadcast %8 : vector<1x256xf32> to vector<2x256xf32>
    %10 = arith.mulf %7, %9 : vector<2x256xf32>
    %c2 = arith.constant 2 : index
    %c0_7 = arith.constant 0 : index
    %11 = vector.load %arg2[%c2, %c0_7] : memref<8x256xf32, #tpu.memory_space<vmem>>, vector<1x256xf32>
    %12 = vector.broadcast %11 : vector<1x256xf32> to vector<2x256xf32>
    %13 = arith.addf %10, %12 : vector<2x256xf32>
    %14 = vector.extract_strided_slice %13 {offsets = [0, 0], sizes = [2, 128], strides = [1, 1]} : vector<2x256xf32> to vector<2x128xf32>
    %15 = vector.extract_strided_slice %13 {offsets = [0, 128], sizes = [2, 128], strides = [1, 1]} : vector<2x256xf32> to vector<2x128xf32>
    %16 = arith.maximumf %14, %15 : vector<2x128xf32>
    %17 = vector.extract_strided_slice %16 {offsets = [0, 0], sizes = [2, 64], strides = [1, 1]} : vector<2x128xf32> to vector<2x64xf32>
    %18 = vector.extract_strided_slice %16 {offsets = [0, 64], sizes = [2, 64], strides = [1, 1]} : vector<2x128xf32> to vector<2x64xf32>
    %19 = arith.maximumf %17, %18 : vector<2x64xf32>
    %20 = vector.extract_strided_slice %19 {offsets = [0, 0], sizes = [2, 32], strides = [1, 1]} : vector<2x64xf32> to vector<2x32xf32>
    %21 = vector.extract_strided_slice %19 {offsets = [0, 32], sizes = [2, 32], strides = [1, 1]} : vector<2x64xf32> to vector<2x32xf32>
    %22 = arith.maximumf %20, %21 : vector<2x32xf32>
    %23 = vector.extract_strided_slice %22 {offsets = [0, 0], sizes = [2, 24], strides = [1, 1]} : vector<2x32xf32> to vector<2x24xf32>
    %c0_8 = arith.constant 0 : index
    %c0_9 = arith.constant 0 : index
    %24 = vector.load %arg3[%c0_8, %c0_9] : memref<48x128xf32, #tpu.memory_space<vmem>>, vector<24x48xf32>
    %cst_10 = arith.constant dense<0.000000e+00> : vector<2x48xf32>
    %25 = tpu.matmul %23, %24, %cst_10 {dimension_numbers = #tpu.dot_dimension_numbers<[1], [0], [0], [1], [0, 0, 1, 1], [], []>} : vector<2x24xf32>, vector<24x48xf32>, vector<2x48xf32> -> vector<2x48xf32>
    %c40 = arith.constant 40 : index
    %c0_11 = arith.constant 0 : index
    %26 = vector.load %arg3[%c40, %c0_11] : memref<48x128xf32, #tpu.memory_space<vmem>>, vector<1x48xf32>
    %27 = vector.broadcast %26 : vector<1x48xf32> to vector<2x48xf32>
    %28 = arith.addf %25, %27 : vector<2x48xf32>
    %29 = vector.extract_strided_slice %28 {offsets = [0, 0], sizes = [2, 24], strides = [1, 1]} : vector<2x48xf32> to vector<2x24xf32>
    %cst_12 = arith.constant 0.000000e+00 : f32
    %30 = vector.broadcast %cst_12 : f32 to vector<2x24xf32>
    %31 = arith.maximumf %29, %30 : vector<2x24xf32>
    %32 = vector.extract_strided_slice %28 {offsets = [0, 24], sizes = [2, 24], strides = [1, 1]} : vector<2x48xf32> to vector<2x24xf32>
    %33 = arith.negf %32 : vector<2x24xf32>
    %34 = math.exp %33 : vector<2x24xf32>
    %cst_13 = arith.constant 1.000000e+00 : f32
    %35 = vector.broadcast %cst_13 : f32 to vector<2x24xf32>
    %36 = arith.addf %35, %34 : vector<2x24xf32>
    %37 = arith.divf %35, %36 : vector<2x24xf32>
    %38 = arith.mulf %31, %37 : vector<2x24xf32>
    %cst_14 = arith.constant 1.000000e+00 : f32
    %39 = vector.broadcast %cst_14 : f32 to vector<2x24xf32>
    %40 = arith.subf %39, %37 : vector<2x24xf32>
    %41 = arith.mulf %40, %23 : vector<2x24xf32>
    %42 = arith.addf %38, %41 : vector<2x24xf32>
    %c0_15 = arith.constant 0 : index
    %c48 = arith.constant 48 : index
    %43 = vector.load %arg3[%c0_15, %c48] : memref<48x128xf32, #tpu.memory_space<vmem>>, vector<24x16xf32>
    %cst_16 = arith.constant dense<0.000000e+00> : vector<2x16xf32>
    %44 = tpu.matmul %42, %43, %cst_16 {dimension_numbers = #tpu.dot_dimension_numbers<[1], [0], [0], [1], [0, 0, 1, 1], [], []>} : vector<2x24xf32>, vector<24x16xf32>, vector<2x16xf32> -> vector<2x16xf32>
    %c40_17 = arith.constant 40 : index
    %c48_18 = arith.constant 48 : index
    %45 = vector.load %arg3[%c40_17, %c48_18] : memref<48x128xf32, #tpu.memory_space<vmem>>, vector<1x16xf32>
    %46 = vector.broadcast %45 : vector<1x16xf32> to vector<2x16xf32>
    %47 = arith.addf %44, %46 : vector<2x16xf32>
    %48 = arith.negf %47 : vector<2x16xf32>
    %49 = math.exp %48 : vector<2x16xf32>
    %cst_19 = arith.constant 1.000000e+00 : f32
    %50 = vector.broadcast %cst_19 : f32 to vector<2x16xf32>
    %51 = arith.addf %50, %49 : vector<2x16xf32>
    %52 = arith.divf %50, %51 : vector<2x16xf32>
    %cst_20 = arith.constant 0.000000e+00 : f32
    %53 = vector.broadcast %cst_20 : f32 to vector<2x16xf32>
    %54 = arith.maximumf %52, %53 : vector<2x16xf32>
    %c24 = arith.constant 24 : index
    %c0_21 = arith.constant 0 : index
    %55 = vector.load %arg3[%c24, %c0_21] : memref<48x128xf32, #tpu.memory_space<vmem>>, vector<16x128xf32>
    %cst_22 = arith.constant dense<0.000000e+00> : vector<2x128xf32>
    %56 = tpu.matmul %54, %55, %cst_22 {dimension_numbers = #tpu.dot_dimension_numbers<[1], [0], [0], [1], [0, 0, 1, 1], [], []>} : vector<2x16xf32>, vector<16x128xf32>, vector<2x128xf32> -> vector<2x128xf32>
    %c41 = arith.constant 41 : index
    %c0_23 = arith.constant 0 : index
    %57 = vector.load %arg3[%c41, %c0_23] : memref<48x128xf32, #tpu.memory_space<vmem>>, vector<1x128xf32>
    %58 = vector.broadcast %57 : vector<1x128xf32> to vector<2x128xf32>
    %59 = arith.addf %56, %58 : vector<2x128xf32>
    %cst_24 = arith.constant 0.000000e+00 : f32
    %60 = vector.broadcast %cst_24 : f32 to vector<2x128xf32>
    %61 = arith.maximumf %59, %60 : vector<2x128xf32>
    %62 = arith.negf %61 : vector<2x128xf32>
    %63 = math.exp %62 : vector<2x128xf32>
    %cst_25 = arith.constant 1.000000e+00 : f32
    %64 = vector.broadcast %cst_25 : f32 to vector<2x128xf32>
    %65 = arith.addf %64, %63 : vector<2x128xf32>
    %66 = arith.divf %64, %65 : vector<2x128xf32>
    %c0_26 = arith.constant 0 : index
    %c0_27 = arith.constant 0 : index
    %67 = vector.load %arg4[%c0_26, %c0_27] : memref<2x128xf32, #tpu.memory_space<vmem>>, vector<2x128xf32>
    tpu.vector_store %arg4[%c0_26, %c0_27], %66 {strides = array<i32>} : memref<2x128xf32, #tpu.memory_space<vmem>>, vector<2x128xf32>,
    return
  }
}

</mosaic_0001>

<llo_original>
// kernel: tpu_custom_call.1
$region0: #{tpu_custom_call.1}
  #allocation0 [shape = 'u32[]', space=smem, size = 0x4, offset = 0x4, fixed_abs, tag = 'smem constant byte address 0x4 - core index']
  #allocation1 [shape = 'u32[72,128]{1,0:T(1,128)}', space=vmem, size = 0x9000, scoped, tag = 'internal scratch']
  %s0 = inlined_call_operand.hbm [shape: f32[2,128], index: 0, kind: input, shape index: {}]
  %s1 = inlined_call_operand.hbm [shape: f32[128,256], index: 1, kind: input, shape index: {}]
  %s2 = inlined_call_operand.hbm [shape: f32[8,256], index: 2, kind: input, shape index: {}]
  %s3 = inlined_call_operand.hbm [shape: f32[48,128], index: 3, kind: input, shape index: {}]
  %s4 = inlined_call_operand.hbm [shape: f32[2,128], index: 4, kind: output, shape index: {}]
  %s5 = sld [smem:[#allocation0]]
  $region42: #{tpu_custom_call.1} parent=0
    _
  %s7 = ssub.s32 1, %s5
  %s8 = scalar_select 0, %s7, %s5
  $region1: #{tpu_custom_call.1} parent=0
    #allocation2 [shape = 'u8[1024]{0}', space=vmem, size = 0x400, scoped, tag = 'input window, operand 0, single buffered']
    #allocation3 [shape = 's32[1]{0}', space=sflag, size = 0x4, scoped, tag = 'scoped memory for tpu_custom_call.1']
    #allocation4 [shape = 's32[1]{0}', space=sflag, size = 0x4, scoped, tag = 'scoped memory for tpu_custom_call.1']
    #allocation5 [shape = 'u8[131072]{0}', space=vmem, size = 0x20000, scoped, tag = 'input window, operand 1, single buffered']
    #allocation6 [shape = 's32[1]{0}', space=sflag, size = 0x4, scoped, tag = 'scoped memory for tpu_custom_call.1']
    #allocation7 [shape = 'u8[8192]{0}', space=vmem, size = 0x2000, scoped, tag = 'input window, operand 2, single buffered']
    #allocation8 [shape = 'u8[24576]{0}', space=vmem, size = 0x6000, scoped, tag = 'input window, operand 3, single buffered']
    #allocation9 [shape = 's32[1]{0}', space=sflag, size = 0x4, scoped, tag = 'scoped memory for tpu_custom_call.1']
    #allocation10 [shape = 'u8[1024]{0}', space=vmem, size = 0x400, scoped, tag = 'output window, operand 0, single buffered']
    %9 = vsyncpa [#allocation3], 0
    %10 = vsyncpa [#allocation6], 0
    %11 = vsyncpa [#allocation9], 0
    %12 = vsyncpa [#allocation4], 0
    // Predicated region
    $region2: #{tpu_custom_call.1} parent=1 // pred_check
      _
    $region3: #{tpu_custom_call.1} parent=1 // pred_check_branch
      %14 = sbr.rel (0) target = $region5
    $region4: #{tpu_custom_call.1} parent=1 // pred_region
      %16 = vsyncadd [#allocation3], 0
      %s18 = sshll.u32 %s0, 4
      %s19 = int_to_ptr.hbm [resolvable:$true] %s18
      %s20 = sshll.u32 [#allocation2], 4
      %s21 = int_to_ptr.vmem [resolvable:$true] %s20
      %23 = dma.hbm_to_vmem [thread:$0]  %s19, 32, %s21, [#allocation3]
    $region5: #{tpu_custom_call.1} parent=1 // pred_fallthru
      _
    // Predicated region
    $region6: #{tpu_custom_call.1} parent=1 // pred_check
      _
    $region7: #{tpu_custom_call.1} parent=1 // pred_check_branch
      %25 = sbr.rel (0) target = $region9
    $region8: #{tpu_custom_call.1} parent=1 // pred_region
      %27 = vsyncadd [#allocation6], 0
      %s28 = sshll.u32 %s1, 4
      %s29 = int_to_ptr.hbm [resolvable:$true] %s28
      %s30 = sshll.u32 [#allocation5], 4
      %s31 = int_to_ptr.vmem [resolvable:$true] %s30
      %36 = dma.hbm_to_vmem [thread:$0]  %s29, 4096, %s31, [#allocation6], 256, 256, 16
    $region9: #{tpu_custom_call.1} parent=1 // pred_fallthru
      _
    // Predicated region
    $region10: #{tpu_custom_call.1} parent=1 // pred_check
      _
    $region11: #{tpu_custom_call.1} parent=1 // pred_check_branch
      %38 = sbr.rel (0) target = $region13
    $region12: #{tpu_custom_call.1} parent=1 // pred_region
      %40 = vsyncadd [#allocation6], 0
      %s42 = sshll.u32 %s2, 4
      %s43 = int_to_ptr.hbm [resolvable:$true] %s42
      %s44 = sshll.u32 [#allocation7], 4
      %s45 = int_to_ptr.vmem [resolvable:$true] %s44
      %47 = dma.hbm_to_vmem [thread:$0]  %s43, 256, %s45, [#allocation6]
    $region13: #{tpu_custom_call.1} parent=1 // pred_fallthru
      _
    // Predicated region
    $region14: #{tpu_custom_call.1} parent=1 // pred_check
      _
    $region15: #{tpu_custom_call.1} parent=1 // pred_check_branch
      %49 = sbr.rel (0) target = $region17
    $region16: #{tpu_custom_call.1} parent=1 // pred_region
      %51 = vsyncadd [#allocation9], 0
      %s52 = sshll.u32 %s3, 4
      %s53 = int_to_ptr.hbm [resolvable:$true] %s52
      %s54 = sshll.u32 [#allocation8], 4
      %s55 = int_to_ptr.vmem [resolvable:$true] %s54
      %60 = dma.hbm_to_vmem [thread:$0]  %s53, 768, %s55, [#allocation9], 128, 128, 8
    $region17: #{tpu_custom_call.1} parent=1 // pred_fallthru
      _
    // Predicated region
    $region18: #{tpu_custom_call.1} parent=1 // pred_check
      _
    $region19: #{tpu_custom_call.1} parent=1 // pred_check_branch
      %62 = sbr.rel (0) target = $region21
    $region20: #{tpu_custom_call.1} parent=1 // pred_region
      %64 = dma.done [#allocation3], 32
    $region21: #{tpu_custom_call.1} parent=1 // pred_fallthru
      _
    // Predicated region
    $region22: #{tpu_custom_call.1} parent=1 // pred_check
      _
    $region23: #{tpu_custom_call.1} parent=1 // pred_check_branch
      %66 = sbr.rel (0) target = $region25
    $region24: #{tpu_custom_call.1} parent=1 // pred_region
      %68 = dma.done [#allocation6], 4096
    $region25: #{tpu_custom_call.1} parent=1 // pred_fallthru
      _
    // Predicated region
    $region26: #{tpu_custom_call.1} parent=1 // pred_check
      _
    $region27: #{tpu_custom_call.1} parent=1 // pred_check_branch
      %70 = sbr.rel (0) target = $region29
    $region28: #{tpu_custom_call.1} parent=1 // pred_region
      %72 = dma.done [#allocation6], 256
    $region29: #{tpu_custom_call.1} parent=1 // pred_fallthru
      _
    // Predicated region
    $region30: #{tpu_custom_call.1} parent=1 // pred_check
      _
    $region31: #{tpu_custom_call.1} parent=1 // pred_check_branch
      %74 = sbr.rel (0) target = $region33
    $region32: #{tpu_custom_call.1} parent=1 // pred_region
      %76 = dma.done [#allocation9], 768
    $region33: #{tpu_custom_call.1} parent=1 // pred_fallthru
      _
    %v77 = vld [vmem:[#allocation2] sm:$0x3]
    %v78 = vld [vmem:[#allocation5] sm:$0xff]
    %v79 = vld [vmem:[#allocation5 + $0x8] sm:$0xff]
    %v80 = vld [vmem:[#allocation5 + $0x10] sm:$0xff]
    %v81 = vld [vmem:[#allocation5 + $0x18] sm:$0xff]
    %v82 = vld [vmem:[#allocation5 + $0x20] sm:$0xff]
    %v83 = vld [vmem:[#allocation5 + $0x28] sm:$0xff]
    %v84 = vld [vmem:[#allocation5 + $0x30] sm:$0xff]
    %v85 = vld [vmem:[#allocation5 + $0x38] sm:$0xff]
    %v86 = vld [vmem:[#allocation5 + $0x40] sm:$0xff]
    %v87 = vld [vmem:[#allocation5 + $0x48] sm:$0xff]
    %v88 = vld [vmem:[#allocation5 + $0x50] sm:$0xff]
    %v89 = vld [vmem:[#allocation5 + $0x58] sm:$0xff]
    %v90 = vld [vmem:[#allocation5 + $0x60] sm:$0xff]
    %v91 = vld [vmem:[#allocation5 + $0x68] sm:$0xff]
    %v92 = vld [vmem:[#allocation5 + $0x70] sm:$0xff]
    %v93 = vld [vmem:[#allocation5 + $0x78] sm:$0xff]
    %v94 = vld [vmem:[#allocation5 + $0x80] sm:$0xff]
    %v95 = vld [vmem:[#allocation5 + $0x88] sm:$0xff]
    %v96 = vld [vmem:[#allocation5 + $0x90] sm:$0xff]
    %v97 = vld [vmem:[#allocation5 + $0x98] sm:$0xff]
    %v98 = vld [vmem:[#allocation5 + $0xa0] sm:$0xff]
    %v99 = vld [vmem:[#allocation5 + $0xa8] sm:$0xff]
    %v100 = vld [vmem:[#allocation5 + $0xb0] sm:$0xff]
    %v101 = vld [vmem:[#allocation5 + $0xb8] sm:$0xff]
    %v102 = vld [vmem:[#allocation5 + $0xc0] sm:$0xff]
    %v103 = vld [vmem:[#allocation5 + $0xc8] sm:$0xff]
    %v104 = vld [vmem:[#allocation5 + $0xd0] sm:$0xff]
    %v105 = vld [vmem:[#allocation5 + $0xd8] sm:$0xff]
    %v106 = vld [vmem:[#allocation5 + $0xe0] sm:$0xff]
    %v107 = vld [vmem:[#allocation5 + $0xe8] sm:$0xff]
    %v108 = vld [vmem:[#allocation5 + $0xf0] sm:$0xff]
    %v109 = vld [vmem:[#allocation5 + $0xf8] sm:$0xff]
    %v110 = vld [vmem:[#allocation7] ss:$8 sm:$0x3]
    %v112 = vperm.slane %v110, 0
    %v113 = vperm.slane %v110, 1
    %116 = vmatpush.msra.mxu0 %v108
    %117 = vmatpush.msra.mxu0 %v106
    %118 = vmatpush.msra.mxu0 %v104
    %119 = vmatpush.msra.mxu0 %v102
    %120 = vmatpush.msra.mxu0 %v100
    %121 = vmatpush.msra.mxu0 %v98
    %122 = vmatpush.msra.mxu0 %v96
    %123 = vmatpush.msra.mxu0 %v94
    %124 = vmatpush.msra.mxu0 %v92
    %125 = vmatpush.msra.mxu0 %v90
    %126 = vmatpush.msra.mxu0 %v88
    %127 = vmatpush.msra.mxu0 %v86
    %128 = vmatpush.msra.mxu0 %v84
    %129 = vmatpush.msra.mxu0 %v82
    %130 = vmatpush.msra.mxu0 %v80
    %131 = vmatpush.msra.mxu0 %v78
    %132 = vmatmul.f32.gmra.mxu0 %v77
    %v133 = vpop.f32.mrf.mxu0
    %v134 = vadd.f32 %v112, %v133
    %135 = vdwg.mxu0
    %136 = vmatpush.msra.mxu0 %v109
    %137 = vmatpush.msra.mxu0 %v107
    %138 = vmatpush.msra.mxu0 %v105
    %139 = vmatpush.msra.mxu0 %v103
    %140 = vmatpush.msra.mxu0 %v101
    %141 = vmatpush.msra.mxu0 %v99
    %142 = vmatpush.msra.mxu0 %v97
    %143 = vmatpush.msra.mxu0 %v95
    %144 = vmatpush.msra.mxu0 %v93
    %145 = vmatpush.msra.mxu0 %v91
    %146 = vmatpush.msra.mxu0 %v89
    %147 = vmatpush.msra.mxu0 %v87
    %148 = vmatpush.msra.mxu0 %v85
    %149 = vmatpush.msra.mxu0 %v83
    %150 = vmatpush.msra.mxu0 %v81
    %151 = vmatpush.msra.mxu0 %v79
    %152 = vmatmul.f32.gmra.mxu0 %v77
    %v153 = vpop.f32.mrf.mxu0
    %v154 = vadd.f32 %v113, %v153
    %155 = vdwg.mxu0
    %v156 = vmax.f32 %v134, 0.0
    %v157 = vmax.f32 %v154, 0.0
    %s158 = scalar_lea.vmem [#allocation7], 1
    %v159 = vld [vmem:[%s158] ss:$8 sm:$0x3]
    %v161 = vperm.slane %v159, 0
    %v162 = vperm.slane %v159, 1
    %v165 = vmul.f32 %v156, %v161
    %v166 = vmul.f32 %v157, %v162
    %s167 = scalar_lea.vmem [#allocation7], 2
    %v168 = vld [vmem:[%s167] ss:$8 sm:$0x3]
    %v170 = vperm.slane %v168, 0
    %v171 = vperm.slane %v168, 1
    %v174 = vadd.f32 %v165, %v170
    %v175 = vadd.f32 %v166, %v171
    %v176 = vmax.f32 %v174, %v175
    %178 = vrot.lane.b32.xlu0 %v176, 64
    %v179 = vpop.permute.xlu0 %178
    %v181 = vmax.f32 %v176, %v179
    %183 = vrot.lane.b32.xlu0 %v181, 96
    %v184 = vpop.permute.xlu0 %183
    %v186 = vmax.f32 %v181, %v184
    %v187 = vld [vmem:[#allocation8] sm:$0xff]
    %v188 = vld [vmem:[#allocation8 + $0x8] sm:$0xff]
    %v189 = vld [vmem:[#allocation8 + $0x10] sm:$0xff]
    %v190 = vld [vmem:[#allocation8 + $0x28] sm:$0x1]
    %v191 = vperm.slane %v190, 0
    %vm192 = vcmask 195584
    %v194 = vsel %vm192, %v186, 0
    %196 = vmatpush.msra.mxu0 0.0
    %197 = vmatpush.msra.mxu0 0.0
    %198 = vmatpush.msra.mxu0 0.0
    %199 = vmatpush.msra.mxu0 0.0
    %200 = vmatpush.msra.mxu0 0.0
    %201 = vmatpush.msra.mxu0 0.0
    %202 = vmatpush.msra.mxu0 0.0
    %203 = vmatpush.msra.mxu0 0.0
    %204 = vmatpush.msra.mxu0 0.0
    %205 = vmatpush.msra.mxu0 0.0
    %206 = vmatpush.msra.mxu0 0.0
    %207 = vmatpush.msra.mxu0 0.0
    %208 = vmatpush.msra.mxu0 0.0
    %209 = vmatpush.msra.mxu0 %v189
    %210 = vmatpush.msra.mxu0 %v188
    %211 = vmatpush.msra.mxu0 %v187
    %212 = vmatmul.f32.gmra.mxu0 %v194
    %v213 = vpop.f32.mrf.mxu0
    %v214 = vadd.f32 %v191, %v213
    %215 = vdwg.mxu0
    %v216 = vmax.f32 %v214, 0.0
    %v217 = vxor.u32 %v214, 2147483648
    %v218 = vmul.f32 %v217, 1.442695
    %v219 = vpow.pop %v218
    %v220 = vadd.f32 %v219, 1.0
    %v221 = vrcp.pop %v220
    %v222 = vmul.f32 %v220, %v221
    %v223 = vsub.f32 1.0, %v222
    %v224 = vmul.f32 %v221, %v223
    %v225 = vadd.f32 %v221, %v224
    %vm226 = vweird.f32 %v220
    %vm227 = vweird.f32 %v221
    %vm228 = vmor %vm226, %vm227
    %v229 = vsel %vm228, %v221, %v225
    %v230 = vand.u32 2147483647, %v220
    %vm231 = vcmp.eq.f32.partialorder %v230, 8.507059e+37
    %v232 = vand.u32 %v220, 2147483648
    %v233 = vor.u32 1.1754944e-38, %v232
    %v234 = vsel %vm231, %v233, %v229
    %v235 = vmul.f32 1.0, %v234
    %237 = vrot.lane.b32.xlu0 %v235, 104
    %v238 = vpop.permute.xlu0 %237
    %v240 = vmul.f32 %v216, %v238
    %v241 = vsub.f32 1.0, %v235
    %242 = vrot.lane.b32.xlu0 %v186, 24
    %v243 = vpop.permute.xlu0 %242
    %v245 = vmul.f32 %v241, %v243
    %247 = vrot.lane.b32.xlu0 %v245, 104
    %v248 = vpop.permute.xlu0 %247
    %v250 = vadd.f32 %v240, %v248
    %254 = vrot.lane.b32.xlu0 %v187, 80
    %v255 = vpop.permute.xlu0 %254
    %256 = vrot.lane.b32.xlu0 %v188, 80
    %v257 = vpop.permute.xlu0 %256
    %258 = vrot.lane.b32.xlu0 %v189, 80
    %v259 = vpop.permute.xlu0 %258
    %264 = vrot.lane.b32.xlu0 %v191, 80
    %v265 = vpop.permute.xlu0 %264
    %v268 = vsel %vm192, %v250, 0
    %270 = vmatpush.msra.mxu0 0.0
    %271 = vmatpush.msra.mxu0 0.0
    %272 = vmatpush.msra.mxu0 0.0
    %273 = vmatpush.msra.mxu0 0.0
    %274 = vmatpush.msra.mxu0 0.0
    %275 = vmatpush.msra.mxu0 0.0
    %276 = vmatpush.msra.mxu0 0.0
    %277 = vmatpush.msra.mxu0 0.0
    %278 = vmatpush.msra.mxu0 0.0
    %279 = vmatpush.msra.mxu0 0.0
    %280 = vmatpush.msra.mxu0 0.0
    %281 = vmatpush.msra.mxu0 0.0
    %282 = vmatpush.msra.mxu0 0.0
    %283 = vmatpush.msra.mxu0 %v259
    %284 = vmatpush.msra.mxu0 %v257
    %285 = vmatpush.msra.mxu0 %v255
    %286 = vmatmul.f32.gmra.mxu0 %v268
    %v287 = vpop.f32.mrf.mxu0
    %v288 = vadd.f32 %v265, %v287
    %289 = vdwg.mxu0
    %v290 = vxor.u32 %v288, 2147483648
    %v291 = vmul.f32 %v290, 1.442695
    %v292 = vpow.pop %v291
    %v293 = vadd.f32 %v292, 1.0
    %v294 = vrcp.pop %v293
    %v295 = vmul.f32 %v293, %v294
    %v296 = vsub.f32 1.0, %v295
    %v297 = vmul.f32 %v294, %v296
    %v298 = vadd.f32 %v294, %v297
    %vm299 = vweird.f32 %v293
    %vm300 = vweird.f32 %v294
    %vm301 = vmor %vm299, %vm300
    %v302 = vsel %vm301, %v294, %v298
    %v303 = vand.u32 2147483647, %v293
    %vm304 = vcmp.eq.f32.partialorder %v303, 8.507059e+37
    %v305 = vand.u32 %v293, 2147483648
    %v306 = vor.u32 1.1754944e-38, %v305
    %v307 = vsel %vm304, %v306, %v302
    %v308 = vmul.f32 1.0, %v307
    %v309 = vmax.f32 %v308, 0.0
    %v310 = vld [vmem:[#allocation8 + $0x18] sm:$0xff]
    %v311 = vld [vmem:[#allocation8 + $0x20] sm:$0xff]
    %v312 = vld [vmem:[#allocation8 + $0x29] sm:$0x1]
    %v313 = vperm.slane %v312, 0
    %vm314 = vcmask 130048
    %v316 = vsel %vm314, %v309, 0
    %318 = vmatpush.msra.mxu0 0.0
    %319 = vmatpush.msra.mxu0 0.0
    %320 = vmatpush.msra.mxu0 0.0
    %321 = vmatpush.msra.mxu0 0.0
    %322 = vmatpush.msra.mxu0 0.0
    %323 = vmatpush.msra.mxu0 0.0
    %324 = vmatpush.msra.mxu0 0.0
    %325 = vmatpush.msra.mxu0 0.0
    %326 = vmatpush.msra.mxu0 0.0
    %327 = vmatpush.msra.mxu0 0.0
    %328 = vmatpush.msra.mxu0 0.0
    %329 = vmatpush.msra.mxu0 0.0
    %330 = vmatpush.msra.mxu0 0.0
    %331 = vmatpush.msra.mxu0 0.0
    %332 = vmatpush.msra.mxu0 %v311
    %333 = vmatpush.msra.mxu0 %v310
    %334 = vmatmul.f32.gmra.mxu0 %v316
    %v335 = vpop.f32.mrf.mxu0
    %v336 = vadd.f32 %v313, %v335
    %337 = vdwg.mxu0
    %v338 = vmax.f32 %v336, 0.0
    %v339 = vxor.u32 %v338, 2147483648
    %v340 = vmul.f32 %v339, 1.442695
    %v341 = vpow.pop %v340
    %v342 = vadd.f32 %v341, 1.0
    %v343 = vrcp.pop %v342
    %v344 = vmul.f32 %v342, %v343
    %v345 = vsub.f32 1.0, %v344
    %v346 = vmul.f32 %v343, %v345
    %v347 = vadd.f32 %v343, %v346
    %vm348 = vweird.f32 %v342
    %vm349 = vweird.f32 %v343
    %vm350 = vmor %vm348, %vm349
    %v351 = vsel %vm350, %v343, %v347
    %v352 = vand.u32 2147483647, %v342
    %vm353 = vcmp.eq.f32.partialorder %v352, 8.507059e+37
    %v354 = vand.u32 %v342, 2147483648
    %v355 = vor.u32 1.1754944e-38, %v354
    %v356 = vsel %vm353, %v355, %v351
    %v357 = vmul.f32 1.0, %v356
    %358 = vst [vmem:[#allocation10] sm:$0x3] %v357
    // Predicated region
    $region34: #{tpu_custom_call.1} parent=1 // pred_check
      _
    $region35: #{tpu_custom_call.1} parent=1 // pred_check_branch
      %360 = sbr.rel (0) target = $region37
    $region36: #{tpu_custom_call.1} parent=1 // pred_region
      %362 = vsyncadd [#allocation4], 0
      %s364 = sshll.u32 [#allocation10], 4
      %s365 = int_to_ptr.vmem [resolvable:$true] %s364
      %s366 = sshll.u32 %s4, 4
      %s367 = int_to_ptr.hbm [resolvable:$true] %s366
      %369 = dma.vmem_to_hbm [thread:$0]  %s365, 32, %s367, [#allocation4]
    $region37: #{tpu_custom_call.1} parent=1 // pred_fallthru
      _
    // Predicated region
    $region38: #{tpu_custom_call.1} parent=1 // pred_check
      _
    $region39: #{tpu_custom_call.1} parent=1 // pred_check_branch
      %371 = sbr.rel (0) target = $region41
    $region40: #{tpu_custom_call.1} parent=1 // pred_region
      %373 = dma.done [#allocation4], 32
    $region41: #{tpu_custom_call.1} parent=1 // pred_fallthru
      _
    %374 = vsyncpa [#allocation3], 1
    %375 = vsyncpa [#allocation6], 1
    %376 = vsyncpa [#allocation9], 1
    %377 = vsyncpa [#allocation4], 1

</llo_original>
